<compile_context>
chip_gen: v5e
topology: v5e:2x2
jax: 0.10.0
libtpu: 0.0.40
codegen_flags: <defaults>
</compile_context>

<pallas_src>
import functools

import jax
import jax.numpy as jnp
from jax import lax
from jax.experimental import pallas as pl
from jax.experimental.pallas import tpu as pltpu

EPS = 1e-5
LANE = 128


def _round_up(n, m):
    return (n + m - 1) // m * m


def _device_kind():
    try:
        return jax.devices()[0].device_kind.lower()
    except Exception:
        return ""


def _has_int_mxu(kind):
    # v4/v5/v6 MXUs take int8; v7x is bf16/fp8 only.
    return any(t in kind for t in ("v4", "v5", "v6"))


def _has_bf16_valu(kind):
    # v5e (and earlier) have no bf16 VALU; v6e/v7x do.
    return ("v6" in kind) or ("v7" in kind)


def _tile_and_vmem(kind, x_itemsize, batch):
    """Per-generation batch tile + explicit scoped-VMEM limit."""
    if any(t in kind for t in ("v4", "v5")):
        # f32-only VPU, small (16 MiB) scoped-VMEM default -> smaller tile,
        # raised limit (128 MiB physical).
        tb, vmem = 256, 64 << 20
    elif "v6" in kind:
        tb, vmem = (1024 if x_itemsize <= 2 else 512), 64 << 20
    else:
        # v7x (64 MiB physical per TC) and unknown chips.
        tb, vmem = (1024 if x_itemsize <= 2 else 512), 48 << 20
    return min(tb, batch), vmem


def topk_gate_kernel(scale_ref, x_ref, wq_ref, gate_ref, idx_ref, *,
                     k, num_experts, mm_dtype, acc_dtype, quant_dtype, clamp_hi):
    # ---- per-token activation quant, in the streaming dtype (no f32 round-trip) ----
    x = x_ref[...].astype(quant_dtype)                                   # (TB, D)
    absmax = jnp.maximum(jnp.max(jnp.abs(x), axis=-1, keepdims=True), EPS)
    s = jnp.asarray(127.0, quant_dtype) / absmax
    x_q = jnp.round(x * s)                       # no clip: |x*s| <= 127 by construction
    if clamp_hi:
        # bf16 rounding of s can push x*s to 128.0; only +128 can wrap int8.
        x_q = jnp.minimum(x_q, jnp.asarray(127.0, quant_dtype))

    w_q = wq_ref[...]                                                    # (E_pad, D)

    # ---- MXU matmul, contracting last dims of both operands (no transpose) ----
    mm = lax.dot_general(
        x_q.astype(mm_dtype), w_q,
        dimension_numbers=(((1,), (1,)), ((), ())),
        preferred_element_type=acc_dtype,
    )                                                                    # (TB, E_pad)

    TB, E_pad = mm.shape
    eidx = lax.broadcasted_iota(jnp.int32, (TB, E_pad), 1)
    if jnp.issubdtype(acc_dtype, jnp.integer):
        neg = jnp.asarray(jnp.iinfo(acc_dtype).min, acc_dtype)
    else:
        neg = jnp.asarray(-jnp.inf, acc_dtype)
    # mask padded expert columns so they can never be selected
    masked = jnp.where(eidx < num_experts, mm, neg) if E_pad > num_experts else mm

    # per-row dequant scale, applied only to the k selected maxima (positive, so
    # the ordering of the raw accumulator equals the ordering of the logits)
    row_scale = scale_ref[0, 0] * absmax.astype(jnp.float32)             # (TB, 1)

    # ---- top-k (k small -> unrolled), softmax + scatter fused into the loop ----
    num = jnp.zeros((TB, E_pad), jnp.float32)
    denom = None
    m0 = None
    idx_cols = []
    for j in range(k):
        m = jnp.max(masked, axis=-1, keepdims=True)                      # (TB,1) raw
        i = jnp.min(jnp.where(masked == m, eidx, E_pad), axis=-1, keepdims=True)
        oh = eidx == i                                                   # (TB,E_pad)
        if j == 0:
            m0 = m.astype(jnp.float32) * row_scale
            e = jnp.ones((TB, 1), jnp.float32)       # exp(top1 - top1) == 1
            denom = e
        else:
            e = jnp.exp(m.astype(jnp.float32) * row_scale - m0)
            denom = denom + e
        num = num + jnp.where(oh, e, 0.0)
        idx_cols.append(i)
        if j < k - 1:
            masked = jnp.where(oh, neg, masked)

    inv = pl.reciprocal(denom, approx=False)       # exact: rows sum to 1 (f32)
    gate_ref[...] = num * inv                      # lane-dense store

    # ---- pack the k indices into the lane-padded (TB, K_pad) int32 output ----
    K_pad = idx_ref.shape[-1]
    kcol = lax.broadcasted_iota(jnp.int32, (TB, K_pad), 1)
    idx = jnp.zeros((TB, K_pad), jnp.int32)
    for j, i in enumerate(idx_cols):
        idx = jnp.where(kcol == j, i, idx)
    idx_ref[...] = idx


def topk_gate(x, w, k=2, *, mm_dtype=None, block_b=None):
    """Returns (full_weights (B, E) f32, top_k_indices (B, k) i32)."""
    B, D = x.shape
    E, D2 = w.shape
    assert D == D2 and 1 <= k <= E

    kind = _device_kind()
    if mm_dtype is None:
        mm_dtype = jnp.int8 if _has_int_mxu(kind) else jnp.bfloat16
    acc_dtype = jnp.int32 if mm_dtype == jnp.int8 else jnp.float32

    # quant math in the streaming dtype where the VPU supports it
    quant_dtype = (jnp.bfloat16
                   if (x.dtype == jnp.bfloat16 and _has_bf16_valu(kind))
                   else jnp.float32)
    clamp_hi = (mm_dtype == jnp.int8) and (quant_dtype == jnp.bfloat16)

    # ---- hoisted BitLinear weight quantization (done once, outside the kernel) ----
    wf = w.astype(jnp.float32)
    w_scale = jnp.mean(jnp.abs(wf)) + EPS           # same scale used to dequantize
    w_q = jnp.clip(jnp.round(wf / w_scale), -1.0, 1.0)

    E_pad = _round_up(E, LANE)                      # lane-dense expert dim
    K_pad = LANE
    w_q_pad = jnp.pad(w_q, ((0, E_pad - E), (0, 0))).astype(mm_dtype)
    # fold the 1/127 dequant constant into the SMEM scalar
    scale_arr = jnp.reshape(w_scale * (1.0 / 127.0), (1, 1)).astype(jnp.float32)

    TB, vmem_limit = _tile_and_vmem(kind, jnp.dtype(x.dtype).itemsize, B)
    if block_b is not None:
        TB = min(block_b, B)

    kernel = functools.partial(
        topk_gate_kernel, k=k, num_experts=E, mm_dtype=mm_dtype,
        acc_dtype=acc_dtype, quant_dtype=quant_dtype, clamp_hi=clamp_hi)

    gate_pad, idx_pad = pl.pallas_call(
        kernel,
        grid=(pl.cdiv(B, TB),),
        out_shape=(
            jax.ShapeDtypeStruct((B, E_pad), jnp.float32),
            jax.ShapeDtypeStruct((B, K_pad), jnp.int32),
        ),
        in_specs=[
            pl.BlockSpec(memory_space=pltpu.MemorySpace.SMEM),   # dequant scalar (1,1)
            pl.BlockSpec((TB, D), lambda i: (i, 0)),             # x tile (streamed, native dtype)
            pl.BlockSpec((E_pad, D), lambda i: (0, 0)),          # quantized weights (resident)
        ],
        out_specs=(
            pl.BlockSpec((TB, E_pad), lambda i: (i, 0)),
            pl.BlockSpec((TB, K_pad), lambda i: (i, 0)),
        ),
        compiler_params=pltpu.CompilerParams(
            dimension_semantics=("parallel",),
            vmem_limit_bytes=vmem_limit,
        ),
    )(scale_arr, x, w_q_pad)

    # NOTE: these slices are extra XLA passes over the outputs; consumers that
    # tolerate lane-padded outputs (padded gate columns are exactly 0) can skip them.
    return gate_pad[:, :E], idx_pad[:, :k]


def topk_gate_ref(x, w, k):
    """Pure-JAX reference (same BitLinear formulation), for correctness check."""
    wf = w.astype(jnp.float32)
    ws = jnp.mean(jnp.abs(wf)) + EPS
    wq = jnp.clip(jnp.round(wf / ws), -1.0, 1.0)
    xf = x.astype(jnp.float32)
    absmax = jnp.maximum(jnp.max(jnp.abs(xf), axis=-1, keepdims=True), EPS)
    xq = jnp.round(xf * (127.0 / absmax))
    logits = (xq @ wq.T) * (ws * (1.0 / 127.0)) * absmax
    vals, idx = lax.top_k(logits, k)
    wts = jax.nn.softmax(vals, axis=-1)
    full = (jax.nn.one_hot(idx, logits.shape[-1], dtype=wts.dtype)
            * wts[..., None]).sum(axis=1)
    return full, idx


if __name__ == "__main__":
    batch, input_dim, num_experts, k = 8, 32, 8, 2

    key = jax.random.PRNGKey(0)
    kx, kw = jax.random.split(key)

    # Deterministic synthetic parameter init (nn.Linear-style uniform bound).
    bound = 1.0 / (input_dim ** 0.5)
    w = jax.random.uniform(kw, (num_experts, input_dim), jnp.float32,
                           minval=-bound, maxval=bound)
    x = jax.random.normal(kx, (batch, input_dim), jnp.float32)

    full_weights, top_k_indices = jax.block_until_ready(topk_gate(x, w, k=k))

    assert full_weights.shape == (batch, num_experts)
    assert top_k_indices.shape == (batch, k)
    assert bool(jnp.all((top_k_indices >= 0) & (top_k_indices < num_experts)))
    # Each row's gate weights sum to 1 (softmax over the k selected experts).
    assert jnp.allclose(full_weights.sum(axis=-1), 1.0, atol=1e-4)

    ref_full, ref_idx = topk_gate_ref(x, w, k)
    assert jnp.allclose(full_weights, ref_full, atol=1e-3, rtol=1e-3)
    assert bool(jnp.all(top_k_indices == ref_idx))

    print("KERNEL_OK")
</pallas_src>

<mosaic_0001>
module attributes {stable_mosaic.version = 11 : i64} {
  func.func @topk_gate_kernel(%arg0: i32, %arg1: memref<1x1xf32, #tpu.memory_space<smem>>, %arg2: memref<8x32xf32, #tpu.memory_space<vmem>>, %arg3: memref<128x32xbf16, #tpu.memory_space<vmem>>, %arg4: memref<8x128xf32, #tpu.memory_space<vmem>>, %arg5: memref<8x128xi32, #tpu.memory_space<vmem>>) attributes {dimension_semantics = [#tpu.dimension_semantics<parallel>], iteration_bounds = array<i64: 1>, scalar_prefetch = 0 : i64, scratch_operands = 0 : i64, tpu.core_type = #tpu.core_type<tc>, window_params = [{transform_indices = @transform_0, window_bounds = array<i64: 1, 1>}, {transform_indices = @transform_1, window_bounds = array<i64: 8, 32>}, {pipeline_mode = #tpu.pipeline_mode<synchronous>, transform_indices = @transform_2, window_bounds = array<i64: 128, 32>}, {transform_indices = @transform_3, window_bounds = array<i64: 8, 128>}, {transform_indices = @transform_4, window_bounds = array<i64: 8, 128>}]} {
    %c0 = arith.constant 0 : index
    %c0_0 = arith.constant 0 : index
    %0 = vector.load %arg2[%c0, %c0_0] : memref<8x32xf32, #tpu.memory_space<vmem>>, vector<8x32xf32>
    %1 = math.absf %0 : vector<8x32xf32>
    %cst = arith.constant dense<0xFF800000> : vector<8xf32>
    %2 = vector.multi_reduction <maximumf>, %1, %cst [1] : vector<8x32xf32> to vector<8xf32>
    %3 = vector.shape_cast %2 : vector<8xf32> to vector<8x1xf32>
    %cst_1 = arith.constant 9.99999974E-6 : f32
    %4 = vector.broadcast %cst_1 : f32 to vector<8x1xf32>
    %5 = arith.maximumf %3, %4 : vector<8x1xf32>
    %cst_2 = arith.constant 1.270000e+02 : f32
    %6 = vector.broadcast %cst_2 : f32 to vector<8x1xf32>
    %7 = arith.divf %6, %5 : vector<8x1xf32>
    %8 = vector.broadcast %7 : vector<8x1xf32> to vector<8x32xf32>
    %9 = arith.mulf %0, %8 : vector<8x32xf32>
    %10 = math.roundeven %9 : vector<8x32xf32>
    %c0_3 = arith.constant 0 : index
    %c0_4 = arith.constant 0 : index
    %11 = vector.load %arg3[%c0_3, %c0_4] : memref<128x32xbf16, #tpu.memory_space<vmem>>, vector<128x32xbf16>
    %12 = arith.truncf %10 : vector<8x32xf32> to vector<8x32xbf16>
    %cst_5 = arith.constant dense<0.000000e+00> : vector<8x128xf32>
    %13 = tpu.matmul %12, %11, %cst_5 {dimension_numbers = #tpu.dot_dimension_numbers<[1], [1], [0], [0], [0, 0, 1, 0], [], []>} : vector<8x32xbf16>, vector<128x32xbf16>, vector<8x128xf32> -> vector<8x128xf32>
    %14 = tpu.iota {dimensions = array<i32: 1>} : vector<8x128xi32>
    %c8_i32 = arith.constant 8 : i32
    %15 = vector.broadcast %c8_i32 : i32 to vector<8x128xi32>
    %16 = arith.cmpi slt, %14, %15 : vector<8x128xi32>
    %cst_6 = arith.constant 0xFF800000 : f32
    %17 = vector.broadcast %cst_6 : f32 to vector<8x128xf32>
    %18 = arith.select %16, %13, %17 : vector<8x128xi1>, vector<8x128xf32>
    %c0_7 = arith.constant 0 : index
    %c0_8 = arith.constant 0 : index
    %19 = memref.load %arg1[%c0_7, %c0_8] : memref<1x1xf32, #tpu.memory_space<smem>>
    %20 = vector.broadcast %19 : f32 to vector<8x1xf32>
    %21 = arith.mulf %20, %5 : vector<8x1xf32>
    %cst_9 = arith.constant 0.000000e+00 : f32
    %22 = vector.broadcast %cst_9 : f32 to vector<8x128xf32>
    %cst_10 = arith.constant dense<0xFF800000> : vector<8xf32>
    %23 = vector.multi_reduction <maximumf>, %18, %cst_10 [1] : vector<8x128xf32> to vector<8xf32>
    %24 = vector.shape_cast %23 : vector<8xf32> to vector<8x1xf32>
    %25 = vector.broadcast %24 : vector<8x1xf32> to vector<8x128xf32>
    %26 = arith.cmpf oeq, %18, %25 : vector<8x128xf32>
    %c128_i32 = arith.constant 128 : i32
    %27 = vector.broadcast %c128_i32 : i32 to vector<8x128xi32>
    %28 = arith.select %26, %14, %27 : vector<8x128xi1>, vector<8x128xi32>
    %cst_11 = arith.constant dense<2147483647> : vector<8xi32>
    %29 = vector.multi_reduction <minsi>, %28, %cst_11 [1] : vector<8x128xi32> to vector<8xi32>
    %30 = vector.shape_cast %29 : vector<8xi32> to vector<8x1xi32>
    %31 = vector.broadcast %30 : vector<8x1xi32> to vector<8x128xi32>
    %32 = arith.cmpi eq, %14, %31 : vector<8x128xi32>
    %33 = arith.mulf %24, %21 : vector<8x1xf32>
    %cst_12 = arith.constant 1.000000e+00 : f32
    %34 = vector.broadcast %cst_12 : f32 to vector<8x1xf32>
    %cst_13 = arith.constant 0.000000e+00 : f32
    %35 = vector.shape_cast %34 : vector<8x1xf32> to vector<8x1xf32>
    %36 = vector.broadcast %35 : vector<8x1xf32> to vector<8x128xf32>
    %37 = vector.broadcast %cst_13 : f32 to vector<8x128xf32>
    %38 = arith.select %32, %36, %37 : vector<8x128xi1>, vector<8x128xf32>
    %39 = arith.addf %22, %38 : vector<8x128xf32>
    %cst_14 = arith.constant 0xFF800000 : f32
    %40 = vector.broadcast %cst_14 : f32 to vector<8x128xf32>
    %41 = arith.select %32, %40, %18 : vector<8x128xi1>, vector<8x128xf32>
    %cst_15 = arith.constant dense<0xFF800000> : vector<8xf32>
    %42 = vector.multi_reduction <maximumf>, %41, %cst_15 [1] : vector<8x128xf32> to vector<8xf32>
    %43 = vector.shape_cast %42 : vector<8xf32> to vector<8x1xf32>
    %44 = vector.broadcast %43 : vector<8x1xf32> to vector<8x128xf32>
    %45 = arith.cmpf oeq, %41, %44 : vector<8x128xf32>
    %c128_i32_16 = arith.constant 128 : i32
    %46 = vector.broadcast %c128_i32_16 : i32 to vector<8x128xi32>
    %47 = arith.select %45, %14, %46 : vector<8x128xi1>, vector<8x128xi32>
    %cst_17 = arith.constant dense<2147483647> : vector<8xi32>
    %48 = vector.multi_reduction <minsi>, %47, %cst_17 [1] : vector<8x128xi32> to vector<8xi32>
    %49 = vector.shape_cast %48 : vector<8xi32> to vector<8x1xi32>
    %50 = vector.broadcast %49 : vector<8x1xi32> to vector<8x128xi32>
    %51 = arith.cmpi eq, %14, %50 : vector<8x128xi32>
    %52 = arith.mulf %43, %21 : vector<8x1xf32>
    %53 = arith.subf %52, %33 : vector<8x1xf32>
    %54 = math.exp %53 : vector<8x1xf32>
    %55 = arith.addf %34, %54 : vector<8x1xf32>
    %cst_18 = arith.constant 0.000000e+00 : f32
    %56 = vector.shape_cast %54 : vector<8x1xf32> to vector<8x1xf32>
    %57 = vector.broadcast %56 : vector<8x1xf32> to vector<8x128xf32>
    %58 = vector.broadcast %cst_18 : f32 to vector<8x128xf32>
    %59 = arith.select %51, %57, %58 : vector<8x128xi1>, vector<8x128xf32>
    %60 = arith.addf %39, %59 : vector<8x128xf32>
    %61 = tpu.reciprocal %55 : vector<8x1xf32> -> vector<8x1xf32>
    %62 = vector.broadcast %61 : vector<8x1xf32> to vector<8x128xf32>
    %63 = arith.mulf %60, %62 : vector<8x128xf32>
    %c0_19 = arith.constant 0 : index
    %c0_20 = arith.constant 0 : index
    %64 = vector.load %arg4[%c0_19, %c0_20] : memref<8x128xf32, #tpu.memory_space<vmem>>, vector<8x128xf32>
    tpu.vector_store %arg4[%c0_19, %c0_20], %63 {strides = array<i32>} : memref<8x128xf32, #tpu.memory_space<vmem>>, vector<8x128xf32>,
    %65 = tpu.iota {dimensions = array<i32: 1>} : vector<8x128xi32>
    %c0_i32 = arith.constant 0 : i32
    %66 = vector.broadcast %c0_i32 : i32 to vector<8x128xi32>
    %c0_i32_21 = arith.constant 0 : i32
    %67 = vector.broadcast %c0_i32_21 : i32 to vector<8x128xi32>
    %68 = arith.cmpi eq, %65, %67 : vector<8x128xi32>
    %69 = vector.shape_cast %30 : vector<8x1xi32> to vector<8x1xi32>
    %70 = vector.broadcast %69 : vector<8x1xi32> to vector<8x128xi32>
    %71 = arith.select %68, %70, %66 : vector<8x128xi1>, vector<8x128xi32>
    %c1_i32 = arith.constant 1 : i32
    %72 = vector.broadcast %c1_i32 : i32 to vector<8x128xi32>
    %73 = arith.cmpi eq, %65, %72 : vector<8x128xi32>
    %74 = vector.shape_cast %49 : vector<8x1xi32> to vector<8x1xi32>
    %75 = vector.broadcast %74 : vector<8x1xi32> to vector<8x128xi32>
    %76 = arith.select %73, %75, %71 : vector<8x128xi1>, vector<8x128xi32>
    %c0_22 = arith.constant 0 : index
    %c0_23 = arith.constant 0 : index
    %77 = vector.load %arg5[%c0_22, %c0_23] : memref<8x128xi32, #tpu.memory_space<vmem>>, vector<8x128xi32>
    tpu.vector_store %arg5[%c0_22, %c0_23], %76 {strides = array<i32>} : memref<8x128xi32, #tpu.memory_space<vmem>>, vector<8x128xi32>,
    return
  }
  func.func @transform_0(%arg0: i32) -> (i32, i32) {
    %c0_i32 = arith.constant 0 : i32
    %c0_i32_0 = arith.constant 0 : i32
    %c0_i32_1 = arith.constant 0 : i32
    return %c0_i32, %c0_i32_0 : i32, i32
  }
  func.func @transform_1(%arg0: i32) -> (i32, i32) {
    %c0_i32 = arith.constant 0 : i32
    %c0_i32_0 = arith.constant 0 : i32
    return %arg0, %c0_i32 : i32, i32
  }
  func.func @transform_2(%arg0: i32) -> (i32, i32) {
    %c0_i32 = arith.constant 0 : i32
    %c0_i32_0 = arith.constant 0 : i32
    %c0_i32_1 = arith.constant 0 : i32
    return %c0_i32, %c0_i32_0 : i32, i32
  }
  func.func @transform_3(%arg0: i32) -> (i32, i32) {
    %c0_i32 = arith.constant 0 : i32
    %c0_i32_0 = arith.constant 0 : i32
    return %arg0, %c0_i32 : i32, i32
  }
  func.func @transform_4(%arg0: i32) -> (i32, i32) {
    %c0_i32 = arith.constant 0 : i32
    %c0_i32_0 = arith.constant 0 : i32
    return %arg0, %c0_i32 : i32, i32
  }
}

</mosaic_0001>

<llo_original>
// kernel: tpu_custom_call.1
$region0: #{tpu_custom_call.1}
  #allocation0 [shape = 'u32[]', space=smem, size = 0x4, offset = 0x4, fixed_abs, tag = 'smem constant byte address 0x4 - core index']
  #allocation1 [shape = 'u32[72,128]{1,0:T(1,128)}', space=vmem, size = 0x9000, scoped, tag = 'internal scratch']
  #allocation2 [shape = 'f32[1,1]{1,0:T(1,128)S(6)}', space=smem, size = 0x200, scoped, tag = 'scoped memory for tpu_custom_call.1']
  %s0 = inlined_call_operand.<no memory space> [shape: f32[1,1], index: 0, kind: input, shape index: {}]
  %s1 = inlined_call_operand.vmem [shape: f32[8,32], index: 1, kind: input, shape index: {}]
  %s2 = inlined_call_operand.vmem [shape: bf16[128,32], index: 2, kind: input, shape index: {}]
  %s3 = inlined_call_operand.hbm [shape: f32[8,128], index: 3, kind: output, shape index: {0}]
  %s4 = inlined_call_operand.hbm [shape: s32[8,128], index: 4, kind: output, shape index: {1}]
  %5 = xla_tuple %s3, %s4
  %s6 = sld [smem:[#allocation0]]
  $region30: #{tpu_custom_call.1} parent=0
    _
  %s8 = ssub.s32 1, %s6
  %s9 = scalar_select 0, %s8, %s6
  %10 = sst [smem:[#allocation2]] %s0
  $region1: #{tpu_custom_call.1} parent=0
    #allocation3 [shape = 'u8[4096]{0}', space=vmem, size = 0x1000, scoped, tag = 'output window, operand 0, single buffered']
    #allocation4 [shape = 's32[1]{0}', space=sflag, size = 0x4, scoped, tag = 'scoped memory for tpu_custom_call.1']
    #allocation5 [shape = 'u8[4096]{0}', space=vmem, size = 0x1000, scoped, tag = 'output window, operand 1, single buffered']
    #allocation6 [shape = 's32[1]{0}', space=sflag, size = 0x4, scoped, tag = 'scoped memory for tpu_custom_call.1']
    %11 = vsyncpa [#allocation4], 0
    %12 = vsyncpa [#allocation6], 0
    // Predicated region
    $region2: #{tpu_custom_call.1} parent=1 // pred_check
      _
    $region3: #{tpu_custom_call.1} parent=1 // pred_check_branch
      %14 = sbr.rel (0) target = $region5
    $region4: #{tpu_custom_call.1} parent=1 // pred_region
      _
    $region5: #{tpu_custom_call.1} parent=1 // pred_fallthru
      _
    // Predicated region
    $region6: #{tpu_custom_call.1} parent=1 // pred_check
      _
    $region7: #{tpu_custom_call.1} parent=1 // pred_check_branch
      %16 = sbr.rel (0) target = $region9
    $region8: #{tpu_custom_call.1} parent=1 // pred_region
      _
    $region9: #{tpu_custom_call.1} parent=1 // pred_fallthru
      _
    // Predicated region
    $region10: #{tpu_custom_call.1} parent=1 // pred_check
      _
    $region11: #{tpu_custom_call.1} parent=1 // pred_check_branch
      %18 = sbr.rel (0) target = $region13
    $region12: #{tpu_custom_call.1} parent=1 // pred_region
      _
    $region13: #{tpu_custom_call.1} parent=1 // pred_fallthru
      _
    %v19 = vld [vmem:[%s1] sm:$0xff]
    %v20 = vand.u32 2147483647, %v19
    %vm21 = vcmask 261120
    %v22 = vsel %vm21, %v20, -inf
    %23 = vmax.xlane.f32.xlu0 %v22
    %v24 = vpop.xlane.xlu0 %23
    %v25 = vmax.f32 %v24, 1e-05
    %v26 = vrcp.pop %v25
    %v27 = vmul.f32 %v25, %v26
    %v28 = vsub.f32 1.0, %v27
    %v29 = vmul.f32 %v26, %v28
    %v30 = vadd.f32 %v26, %v29
    %vm31 = vweird.f32 %v25
    %vm32 = vweird.f32 %v26
    %vm33 = vmor %vm31, %vm32
    %v34 = vsel %vm33, %v26, %v30
    %v35 = vand.u32 2147483647, %v25
    %vm36 = vcmp.eq.f32.partialorder %v35, 8.507059e+37
    %v37 = vand.u32 %v25, 2147483648
    %v38 = vor.u32 1.1754944e-38, %v37
    %v39 = vsel %vm36, %v38, %v34
    %v40 = vmul.f32 127.0, %v39
    %v41 = vmul.f32 %v19, %v40
    %v42 = vround.ne.pseudo %v41
    %v43 = vld [vmem:[%s2] sm:$0xf]
    %v44 = vld [vmem:[%s2 + $0x4] sm:$0xf]
    %v45 = vld [vmem:[%s2 + $0x8] sm:$0xf]
    %v46 = vld [vmem:[%s2 + $0xc] sm:$0xf]
    %v47 = vld [vmem:[%s2 + $0x10] sm:$0xf]
    %v48 = vld [vmem:[%s2 + $0x14] sm:$0xf]
    %v49 = vld [vmem:[%s2 + $0x18] sm:$0xf]
    %v50 = vld [vmem:[%s2 + $0x1c] sm:$0xf]
    %v51 = vld [vmem:[%s2 + $0x20] sm:$0xf]
    %v52 = vld [vmem:[%s2 + $0x24] sm:$0xf]
    %v53 = vld [vmem:[%s2 + $0x28] sm:$0xf]
    %v54 = vld [vmem:[%s2 + $0x2c] sm:$0xf]
    %v55 = vld [vmem:[%s2 + $0x30] sm:$0xf]
    %v56 = vld [vmem:[%s2 + $0x34] sm:$0xf]
    %v57 = vld [vmem:[%s2 + $0x38] sm:$0xf]
    %v58 = vld [vmem:[%s2 + $0x3c] sm:$0xf]
    %v59 = vpack.c.bf16 %v42, %v42
    %v76 = vunpack.c.l.b16 %v43
    %v77 = vunpack.c.l.b16 %v44
    %v78 = vunpack.c.l.b16 %v45
    %v79 = vunpack.c.l.b16 %v46
    %v80 = vunpack.c.l.b16 %v47
    %v81 = vunpack.c.l.b16 %v48
    %v82 = vunpack.c.l.b16 %v49
    %v83 = vunpack.c.l.b16 %v50
    %v84 = vunpack.c.l.b16 %v51
    %v85 = vunpack.c.l.b16 %v52
    %v86 = vunpack.c.l.b16 %v53
    %v87 = vunpack.c.l.b16 %v54
    %v88 = vunpack.c.l.b16 %v55
    %v89 = vunpack.c.l.b16 %v56
    %v90 = vunpack.c.l.b16 %v57
    %v91 = vunpack.c.l.b16 %v58
    %v92 = vpack.c.b16 %v77, %v76
    %v93 = vpack.c.b16 %v79, %v78
    %v94 = vpack.c.b16 %v81, %v80
    %v95 = vpack.c.b16 %v83, %v82
    %v96 = vpack.c.b16 %v85, %v84
    %v97 = vpack.c.b16 %v87, %v86
    %v98 = vpack.c.b16 %v89, %v88
    %v99 = vpack.c.b16 %v91, %v90
    %v101 = vsel %vm21, %v59, 0
    %v104 = vsel %vm21, %v92, 0
    %v107 = vsel %vm21, %v93, 0
    %v110 = vsel %vm21, %v94, 0
    %v113 = vsel %vm21, %v95, 0
    %v116 = vsel %vm21, %v96, 0
    %v119 = vsel %vm21, %v97, 0
    %v122 = vsel %vm21, %v98, 0
    %v125 = vsel %vm21, %v99, 0
    %127 = vmatpush.bf16.xpose.msra.mxu0 %v125
    %128 = vmatpush.bf16.xpose.msra.mxu0 %v122
    %129 = vmatpush.bf16.xpose.msra.mxu0 %v119
    %130 = vmatpush.bf16.xpose.msra.mxu0 %v116
    %131 = vmatpush.bf16.xpose.msra.mxu0 %v113
    %132 = vmatpush.bf16.xpose.msra.mxu0 %v110
    %133 = vmatpush.bf16.xpose.msra.mxu0 %v107
    %134 = vmatpush.bf16.xpose.msra.mxu0 %v104
    %135 = vmatmul.bf16.gmra.mxu0 %v101
    %v136 = vpop.f32.mrf.mxu0
    %v137 = vadd.f32 0.0, %v136
    %v138 = vpop.f32.mrf.mxu0
    %139 = vdwg.mxu0
    %v140 = vlaneseq
    %v141 = vand.u32 %v140, 127
    %vm142 = vcmp.lt.s32.totalorder %v141, 8
    %v143 = vsel %vm142, %v137, -inf
    %s144 = sld [smem:[#allocation2]]
    %v145 = vstv %s144
    %v146 = vmul.f32 %v145, %v25
    %147 = vmax.xlane.f32.xlu0 %v143
    %v148 = vpop.xlane.xlu0 %147
    %vm149 = vcmp.eq.f32.partialorder %v143, %v148
    %v150 = vsel %vm149, %v141, 128
    %v151 = vand.u32 %v150, 65535
    %v152 = vshra.s32 %v150, 16
    %v153 = vcvt.s32.f32 %v151
    %v154 = vcvt.s32.f32 %v152
    %155 = vmin.xlane.f32.xlu0 %v154
    %v156 = vpop.xlane.xlu0 %155
    %vm157 = vcmp.eq.f32.partialorder %v154, %v156
    %v158 = vsel %vm157, %v153, inf
    %159 = vmin.xlane.f32.xlu0 %v158
    %v160 = vpop.xlane.xlu0 %159
    %v161 = vcvt.f32.s32 %v160
    %v162 = vcvt.f32.s32 %v156
    %v163 = vshll.u32 %v162, 16
    %v164 = vadd.s32 %v163, %v161
    %vm165 = vcmp.eq.s32.totalorder %v141, %v164
    %v166 = vmul.f32 %v148, %v146
    %v167 = vsel %vm165, 1.0, 0.0
    %v168 = vadd.f32 %v167, 0.0
    %v169 = vsel %vm165, -inf, %v143
    %170 = vmax.xlane.f32.xlu0 %v169
    %v171 = vpop.xlane.xlu0 %170
    %vm172 = vcmp.eq.f32.partialorder %v169, %v171
    %v173 = vsel %vm172, %v141, 128
    %v174 = vand.u32 %v173, 65535
    %v175 = vshra.s32 %v173, 16
    %v176 = vcvt.s32.f32 %v174
    %v177 = vcvt.s32.f32 %v175
    %178 = vmin.xlane.f32.xlu0 %v177
    %v179 = vpop.xlane.xlu0 %178
    %vm180 = vcmp.eq.f32.partialorder %v177, %v179
    %v181 = vsel %vm180, %v176, inf
    %182 = vmin.xlane.f32.xlu0 %v181
    %v183 = vpop.xlane.xlu0 %182
    %v184 = vcvt.f32.s32 %v183
    %v185 = vcvt.f32.s32 %v179
    %v186 = vshll.u32 %v185, 16
    %v187 = vadd.s32 %v186, %v184
    %vm188 = vcmp.eq.s32.totalorder %v141, %v187
    %v189 = vmul.f32 %v171, %v146
    %v190 = vsub.f32 %v189, %v166
    %v191 = vmul.f32 %v190, 1.442695
    %v192 = vpow.pop %v191
    %v193 = vadd.f32 %v192, 1.0
    %v194 = vsel %vm188, %v192, 0.0
    %v195 = vadd.f32 %v168, %v194
    %v196 = vrcp.pop %v193
    %v197 = vmul.f32 %v193, %v196
    %v198 = vsub.f32 1.0, %v197
    %v199 = vmul.f32 %v196, %v198
    %v200 = vadd.f32 %v196, %v199
    %vm201 = vweird.f32 %v193
    %vm202 = vweird.f32 %v196
    %vm203 = vmor %vm201, %vm202
    %v204 = vsel %vm203, %v196, %v200
    %v205 = vand.u32 2147483647, %v193
    %vm206 = vcmp.eq.f32.partialorder %v205, 8.507059e+37
    %v207 = vand.u32 %v193, 2147483648
    %v208 = vor.u32 1.1754944e-38, %v207
    %v209 = vsel %vm206, %v208, %v204
    %v210 = vmul.f32 %v195, %v209
    %211 = vst [vmem:[#allocation3] sm:$0xff] %v210
    %vm212 = vcmp.eq.s32.totalorder %v141, 0
    %v213 = vsel %vm212, %v164, 0
    %vm214 = vcmp.eq.s32.totalorder %v141, 1
    %v215 = vsel %vm214, %v187, %v213
    %216 = vst [vmem:[#allocation5] sm:$0xff] %v215
    // Predicated region
    $region14: #{tpu_custom_call.1} parent=1 // pred_check
      _
    $region15: #{tpu_custom_call.1} parent=1 // pred_check_branch
      %218 = sbr.rel (0) target = $region17
    $region16: #{tpu_custom_call.1} parent=1 // pred_region
      %220 = vsyncadd [#allocation4], 0
      %s222 = sshll.u32 [#allocation3], 4
      %s223 = int_to_ptr.vmem [resolvable:$true] %s222
      %s224 = sshll.u32 %s3, 4
      %s225 = int_to_ptr.hbm [resolvable:$true] %s224
      %227 = dma.vmem_to_hbm [thread:$0]  %s223, 128, %s225, [#allocation4]
    $region17: #{tpu_custom_call.1} parent=1 // pred_fallthru
      _
    // Predicated region
    $region18: #{tpu_custom_call.1} parent=1 // pred_check
      _
    $region19: #{tpu_custom_call.1} parent=1 // pred_check_branch
      %229 = sbr.rel (0) target = $region21
    $region20: #{tpu_custom_call.1} parent=1 // pred_region
      %231 = vsyncadd [#allocation6], 0
      %s233 = sshll.u32 [#allocation5], 4
      %s234 = int_to_ptr.vmem [resolvable:$true] %s233
      %s235 = sshll.u32 %s4, 4
      %s236 = int_to_ptr.hbm [resolvable:$true] %s235
      %238 = dma.vmem_to_hbm [thread:$0]  %s234, 128, %s236, [#allocation6]
    $region21: #{tpu_custom_call.1} parent=1 // pred_fallthru
      _
    // Predicated region
    $region22: #{tpu_custom_call.1} parent=1 // pred_check
      _
    $region23: #{tpu_custom_call.1} parent=1 // pred_check_branch
      %240 = sbr.rel (0) target = $region25
    $region24: #{tpu_custom_call.1} parent=1 // pred_region
      %242 = dma.done [#allocation4], 128
    $region25: #{tpu_custom_call.1} parent=1 // pred_fallthru
      _
    // Predicated region
    $region26: #{tpu_custom_call.1} parent=1 // pred_check
      _
    $region27: #{tpu_custom_call.1} parent=1 // pred_check_branch
      %244 = sbr.rel (0) target = $region29
    $region28: #{tpu_custom_call.1} parent=1 // pred_region
      %246 = dma.done [#allocation6], 128
    $region29: #{tpu_custom_call.1} parent=1 // pred_fallthru
      _
    %247 = vsyncpa [#allocation4], 1
    %248 = vsyncpa [#allocation6], 1

</llo_original>
